<compile_context>
chip_gen: v5e
topology: v5e:2x2
jax: 0.10.0
libtpu: 0.0.40
codegen_flags: <defaults>
</compile_context>

<pallas_src>
import functools

import jax
import jax.numpy as jnp
from jax import lax
from jax.experimental import pallas as pl
from jax.experimental.pallas import tpu as pltpu


def _pick_l_tile(L):
    """Largest lane-dense tile (multiple of 128) dividing L; else fall back gracefully."""
    for t in (512, 256, 128):
        if L % t == 0:
            return t
    if L <= 1024:
        return L
    for t in range(1024, 0, -1):
        if L % t == 0:
            return t
    return L


def _depthwise_pointwise(x_t, hl, hr, wdw, wpw, L_t):
    """Depthwise k=3 (with halo columns) + pointwise 1x1.

    x_t : (C_in, L_t) f32 tile, hl/hr : (C_in, 1) halo columns (zeros at sequence edges),
    wdw : (C_in, 3), wpw : (C_out, C_in).  Returns y : (C_out, L_t) f32.
    """
    C_in = x_t.shape[0]
    if L_t % 128 == 0:
        # Lane shifts on the XLU slot (free next to the VPU FMAs); patch the wrapped lane.
        lane = lax.broadcasted_iota(jnp.int32, (C_in, L_t), 1)
        xm1 = jnp.where(lane == 0, hl, pltpu.roll(x_t, shift=1, axis=1))          # x[l-1]
        xp1 = jnp.where(lane == L_t - 1, hr, pltpu.roll(x_t, shift=L_t - 1, axis=1))  # x[l+1]
    else:
        # Small / ragged tiles (e.g. the toy L=16 case): static slice + concat.
        xm1 = jnp.concatenate([hl, x_t[:, :L_t - 1]], axis=1)
        xp1 = jnp.concatenate([x_t[:, 1:], hr], axis=1)

    w0 = wdw[:, 0:1]
    w1 = wdw[:, 1:2]
    w2 = wdw[:, 2:3]
    dw = w0 * xm1 + w1 * x_t + w2 * xp1                       # (C_in, L_t), 3 FMAs / elem

    # Pointwise conv == one wide 2-D matmul on the MXU, f32 accumulation.
    # (bf16 inputs would roughly double MXU rate on v6e/v7x but breaks the 1e-4 check.)
    return jnp.dot(wpw, dw, preferred_element_type=jnp.float32)  # (C_out, L_t)


def _stats_kernel(x_ref, xl_ref, xr_ref, wdw_ref, wpw_ref, stats_ref, *, L_t):
    """Pass 1: per-tile partial sums of y and y^2 per output channel."""
    y = _depthwise_pointwise(x_ref[0], xl_ref[0], xr_ref[0],
                             wdw_ref[...], wpw_ref[...], L_t)
    s = jnp.sum(y, axis=1, keepdims=True)            # (C_out, 1)
    ss = jnp.sum(y * y, axis=1, keepdims=True)       # (C_out, 1)
    c_out = y.shape[0]
    stats_ref[...] = jnp.concatenate([s, ss], axis=1).reshape(1, 1, c_out, 2)


def _apply_kernel(x_ref, xl_ref, xr_ref, wdw_ref, wpw_ref, scale_ref, shift_ref,
                  o_ref, *, L_t):
    """Pass 2: recompute y, apply fused BN affine (y*scale + shift) and ReLU."""
    y = _depthwise_pointwise(x_ref[0], xl_ref[0], xr_ref[0],
                             wdw_ref[...], wpw_ref[...], L_t)
    out = jnp.maximum(y * scale_ref[...] + shift_ref[...], 0.0)   # single FMA + max per elem
    o_ref[...] = out[None].astype(o_ref.dtype)


def depthwise_separable_conv(x, w_dw, w_pw, gamma, beta,
                             kernel_size=3, padding=1, eps=1e-5):
    """x: (N, C_in, L) f32 -> (N, C_out, L) f32."""
    assert kernel_size == 3 and padding == 1, "kernel supports k=3 / pad=1 (module defaults)"
    N, C_in, L = x.shape
    C_out = w_pw.shape[0]
    L_t = _pick_l_tile(L)
    G_L = L // L_t

    x = x.astype(jnp.float32)
    w_dw = w_dw.astype(jnp.float32).reshape(C_in, kernel_size)
    w_pw = w_pw.astype(jnp.float32).reshape(C_out, C_in)
    gamma = gamma.astype(jnp.float32).reshape(C_out)
    beta = beta.astype(jnp.float32).reshape(C_out)

    # Halo columns for each (n, l_tile): the single column just left / right of the tile
    # (zeros at sequence edges == the conv's zero padding).  Tiny arrays; they replace a
    # full wrapper-side jnp.pad copy of x.
    zcol = jnp.zeros((N, C_in, 1), jnp.float32)
    if G_L > 1:
        left = jnp.concatenate([zcol, x[:, :, L_t - 1:L - 1:L_t]], axis=-1)   # (N, C_in, G_L)
        right = jnp.concatenate([x[:, :, L_t::L_t], zcol], axis=-1)           # (N, C_in, G_L)
    else:
        left, right = zcol, zcol
    xl = left.transpose(0, 2, 1).reshape(N * G_L, C_in, 1)
    xr = right.transpose(0, 2, 1).reshape(N * G_L, C_in, 1)

    # Block specs.  Last two dims of every block are (8,128)-legal: they either equal the
    # full array dims or L_t is a multiple of 128.
    x_spec = pl.BlockSpec((1, C_in, L_t), lambda n, l: (n, 0, l))
    halo_spec = pl.BlockSpec((1, C_in, 1), lambda n, l: (n * G_L + l, 0, 0))
    wdw_spec = pl.BlockSpec((C_in, kernel_size), lambda n, l: (0, 0))
    wpw_spec = pl.BlockSpec((C_out, C_in), lambda n, l: (0, 0))
    chan_spec = pl.BlockSpec((C_out, 1), lambda n, l: (0, 0))

    cparams = pltpu.CompilerParams(
        dimension_semantics=("parallel", "parallel"),   # independent tiles; megacore-safe
        vmem_limit_bytes=32 * 1024 * 1024)              # fits v7x scoped VMEM w/ headroom

    conv_flops = 2 * N * L * C_in * (kernel_size + C_out)
    x_bytes = N * C_in * L * 4
    stats_cost = pl.CostEstimate(flops=conv_flops + 4 * N * C_out * L,
                                 transcendentals=0,
                                 bytes_accessed=x_bytes + N * G_L * C_out * 2 * 4)
    apply_cost = pl.CostEstimate(flops=conv_flops + 3 * N * C_out * L,
                                 transcendentals=0,
                                 bytes_accessed=x_bytes + N * C_out * L * 4)

    # Pass 1: per-tile partial BN statistics.
    stats = pl.pallas_call(
        functools.partial(_stats_kernel, L_t=L_t),
        grid=(N, G_L),
        in_specs=[x_spec, halo_spec, halo_spec, wdw_spec, wpw_spec],
        out_specs=pl.BlockSpec((1, 1, C_out, 2), lambda n, l: (n, l, 0, 0)),
        out_shape=jax.ShapeDtypeStruct((N, G_L, C_out, 2), jnp.float32),
        compiler_params=cparams,
        cost_estimate=stats_cost,
    )(x, xl, xr, w_dw, w_pw)

    # Tiny reduction + BN affine folding (plain XLA on (C_out,)-sized arrays).
    sums = jnp.sum(stats, axis=(0, 1))                     # (C_out, 2)
    cnt = jnp.float32(N * L)
    mean = sums[:, 0] / cnt
    var = jnp.maximum(sums[:, 1] / cnt - mean * mean, 0.0)  # biased batch variance
    scale = gamma * lax.rsqrt(var + eps)
    shift = beta - mean * scale
    scale2 = scale.reshape(C_out, 1)
    shift2 = shift.reshape(C_out, 1)

    # Pass 2: recompute conv per tile, fused normalize + ReLU, lane-dense output tiles.
    out = pl.pallas_call(
        functools.partial(_apply_kernel, L_t=L_t),
        grid=(N, G_L),
        in_specs=[x_spec, halo_spec, halo_spec, wdw_spec, wpw_spec, chan_spec, chan_spec],
        out_specs=pl.BlockSpec((1, C_out, L_t), lambda n, l: (n, 0, l)),
        out_shape=jax.ShapeDtypeStruct((N, C_out, L), jnp.float32),
        compiler_params=cparams,
        cost_estimate=apply_cost,
    )(x, xl, xr, w_dw, w_pw, scale2, shift2)
    return out


def _reference(x, w_dw, w_pw, gamma, beta, kernel_size=3, padding=1, eps=1e-5):
    N, C_in, L = x.shape
    C_out = w_pw.shape[0]
    dw = lax.conv_general_dilated(
        x, w_dw.reshape(C_in, 1, kernel_size), window_strides=(1,),
        padding=((padding, padding),), feature_group_count=C_in,
        dimension_numbers=('NCH', 'OIH', 'NCH'))
    pw = lax.conv_general_dilated(
        dw, w_pw.reshape(C_out, C_in, 1), window_strides=(1,),
        padding=((0, 0),), dimension_numbers=('NCH', 'OIH', 'NCH'))
    mean = pw.mean(axis=(0, 2), keepdims=True)
    var = ((pw - mean) ** 2).mean(axis=(0, 2), keepdims=True)
    y = (pw - mean) / jnp.sqrt(var + eps)
    y = gamma.reshape(1, -1, 1) * y + beta.reshape(1, -1, 1)
    return jnp.maximum(y, 0.0)


if __name__ == "__main__":
    N, nin, nout, L, K, pad = 2, 4, 8, 16, 3, 1

    key = jax.random.PRNGKey(0)
    kx, kdw, kpw = jax.random.split(key, 3)

    x = jax.random.normal(kx, (N, nin, L), dtype=jnp.float32)
    # PyTorch shapes, squeezed: depthwise.weight (nin,1,K) -> (nin,K);
    #                           pointwise.weight (nout,nin,1) -> (nout,nin).
    w_dw = jax.random.normal(kdw, (nin, K), dtype=jnp.float32) * 0.3
    w_pw = jax.random.normal(kpw, (nout, nin), dtype=jnp.float32) * 0.3
    gamma = jnp.ones((nout,), dtype=jnp.float32)   # BN weight
    beta = jnp.zeros((nout,), dtype=jnp.float32)   # BN bias

    fn = jax.jit(depthwise_separable_conv)
    out = jax.block_until_ready(fn(x, w_dw, w_pw, gamma, beta))

    ref = _reference(x, w_dw, w_pw, gamma, beta, kernel_size=K, padding=pad)
    assert out.shape == (N, nout, L)
    assert jnp.allclose(out, ref, atol=1e-4, rtol=1e-4), "mismatch vs reference"

    # TODO(synk): BatchNorm running_mean/running_var buffer updates (a training-time side
    # effect of nn.BatchNorm1d) are not produced; only the forward output is computed.
    print("KERNEL_OK")
</pallas_src>

<mosaic_0001>
module attributes {stable_mosaic.version = 11 : i64} {
  func.func @_stats_kernel(%arg0: i32, %arg1: i32, %arg2: memref<1x4x16xf32, #tpu.memory_space<vmem>>, %arg3: memref<1x4x1xf32, #tpu.memory_space<vmem>>, %arg4: memref<1x4x1xf32, #tpu.memory_space<vmem>>, %arg5: memref<4x3xf32, #tpu.memory_space<vmem>>, %arg6: memref<8x4xf32, #tpu.memory_space<vmem>>, %arg7: memref<1x1x8x2xf32, #tpu.memory_space<vmem>>) attributes {dimension_semantics = [#tpu.dimension_semantics<parallel>, #tpu.dimension_semantics<parallel>], iteration_bounds = array<i64: 2, 1>, scalar_prefetch = 0 : i64, scratch_operands = 0 : i64, tpu.core_type = #tpu.core_type<tc>, window_params = [{transform_indices = @transform_0, window_bounds = array<i64: 1, 4, 16>}, {transform_indices = @transform_1, window_bounds = array<i64: 1, 4, 1>}, {transform_indices = @transform_2, window_bounds = array<i64: 1, 4, 1>}, {pipeline_mode = #tpu.pipeline_mode<synchronous>, transform_indices = @transform_3, window_bounds = array<i64: 4, 3>}, {pipeline_mode = #tpu.pipeline_mode<synchronous>, transform_indices = @transform_4, window_bounds = array<i64: 8, 4>}, {transform_indices = @transform_5, window_bounds = array<i64: 1, 1, 8, 2>}]} {
    %c0 = arith.constant 0 : index
    %c0_0 = arith.constant 0 : index
    %c0_1 = arith.constant 0 : index
    %0 = vector.load %arg2[%c0, %c0_0, %c0_1] : memref<1x4x16xf32, #tpu.memory_space<vmem>>, vector<1x4x16xf32>
    %1 = vector.shape_cast %0 : vector<1x4x16xf32> to vector<4x16xf32>
    %c0_2 = arith.constant 0 : index
    %c0_3 = arith.constant 0 : index
    %c0_4 = arith.constant 0 : index
    %2 = vector.load %arg3[%c0_2, %c0_3, %c0_4] : memref<1x4x1xf32, #tpu.memory_space<vmem>>, vector<1x4x1xf32>
    %3 = vector.shape_cast %2 : vector<1x4x1xf32> to vector<4x1xf32>
    %c0_5 = arith.constant 0 : index
    %c0_6 = arith.constant 0 : index
    %c0_7 = arith.constant 0 : index
    %4 = vector.load %arg4[%c0_5, %c0_6, %c0_7] : memref<1x4x1xf32, #tpu.memory_space<vmem>>, vector<1x4x1xf32>
    %5 = vector.shape_cast %4 : vector<1x4x1xf32> to vector<4x1xf32>
    %c0_8 = arith.constant 0 : index
    %c0_9 = arith.constant 0 : index
    %6 = vector.load %arg5[%c0_8, %c0_9] : memref<4x3xf32, #tpu.memory_space<vmem>>, vector<4x3xf32>
    %c0_10 = arith.constant 0 : index
    %c0_11 = arith.constant 0 : index
    %7 = vector.load %arg6[%c0_10, %c0_11] : memref<8x4xf32, #tpu.memory_space<vmem>>, vector<8x4xf32>
    %8 = vector.extract_strided_slice %1 {offsets = [0, 0], sizes = [4, 15], strides = [1, 1]} : vector<4x16xf32> to vector<4x15xf32>
    %9 = tpu.concatenate %3, %8 in 1 : vector<4x1xf32>, vector<4x15xf32> -> vector<4x16xf32>
    %10 = vector.extract_strided_slice %1 {offsets = [0, 1], sizes = [4, 15], strides = [1, 1]} : vector<4x16xf32> to vector<4x15xf32>
    %11 = tpu.concatenate %10, %5 in 1 : vector<4x15xf32>, vector<4x1xf32> -> vector<4x16xf32>
    %12 = vector.extract_strided_slice %6 {offsets = [0, 0], sizes = [4, 1], strides = [1, 1]} : vector<4x3xf32> to vector<4x1xf32>
    %13 = vector.extract_strided_slice %6 {offsets = [0, 1], sizes = [4, 1], strides = [1, 1]} : vector<4x3xf32> to vector<4x1xf32>
    %14 = vector.extract_strided_slice %6 {offsets = [0, 2], sizes = [4, 1], strides = [1, 1]} : vector<4x3xf32> to vector<4x1xf32>
    %15 = vector.broadcast %12 : vector<4x1xf32> to vector<4x16xf32>
    %16 = arith.mulf %15, %9 : vector<4x16xf32>
    %17 = vector.broadcast %13 : vector<4x1xf32> to vector<4x16xf32>
    %18 = arith.mulf %17, %1 : vector<4x16xf32>
    %19 = arith.addf %16, %18 : vector<4x16xf32>
    %20 = vector.broadcast %14 : vector<4x1xf32> to vector<4x16xf32>
    %21 = arith.mulf %20, %11 : vector<4x16xf32>
    %22 = arith.addf %19, %21 : vector<4x16xf32>
    %cst = arith.constant dense<0.000000e+00> : vector<8x16xf32>
    %23 = tpu.matmul %7, %22, %cst {dimension_numbers = #tpu.dot_dimension_numbers<[1], [0], [0], [1], [0, 0, 1, 1], [], []>} : vector<8x4xf32>, vector<4x16xf32>, vector<8x16xf32> -> vector<8x16xf32>
    %cst_12 = arith.constant dense<0.000000e+00> : vector<8xf32>
    %24 = vector.multi_reduction <add>, %23, %cst_12 [1] : vector<8x16xf32> to vector<8xf32>
    %25 = vector.shape_cast %24 : vector<8xf32> to vector<8x1xf32>
    %26 = arith.mulf %23, %23 : vector<8x16xf32>
    %cst_13 = arith.constant dense<0.000000e+00> : vector<8xf32>
    %27 = vector.multi_reduction <add>, %26, %cst_13 [1] : vector<8x16xf32> to vector<8xf32>
    %28 = vector.shape_cast %27 : vector<8xf32> to vector<8x1xf32>
    %29 = tpu.concatenate %25, %28 in 1 : vector<8x1xf32>, vector<8x1xf32> -> vector<8x2xf32>
    %30 = vector.shape_cast %29 : vector<8x2xf32> to vector<1x1x8x2xf32>
    %c0_14 = arith.constant 0 : index
    %c0_15 = arith.constant 0 : index
    %c0_16 = arith.constant 0 : index
    %c0_17 = arith.constant 0 : index
    %31 = vector.load %arg7[%c0_14, %c0_15, %c0_16, %c0_17] : memref<1x1x8x2xf32, #tpu.memory_space<vmem>>, vector<1x1x8x2xf32>
    tpu.vector_store %arg7[%c0_14, %c0_15, %c0_16, %c0_17], %30 {strides = array<i32>} : memref<1x1x8x2xf32, #tpu.memory_space<vmem>>, vector<1x1x8x2xf32>,
    return
  }
  func.func @transform_0(%arg0: i32, %arg1: i32) -> (i32, i32, i32) {
    %c0_i32 = arith.constant 0 : i32
    %c0_i32_0 = arith.constant 0 : i32
    return %arg0, %c0_i32, %arg1 : i32, i32, i32
  }
  func.func @transform_1(%arg0: i32, %arg1: i32) -> (i32, i32, i32) {
    %c1_i32 = arith.constant 1 : i32
    %0 = arith.muli %arg0, %c1_i32 : i32
    %1 = arith.addi %0, %arg1 : i32
    %c0_i32 = arith.constant 0 : i32
    %c0_i32_0 = arith.constant 0 : i32
    %c0_i32_1 = arith.constant 0 : i32
    return %1, %c0_i32, %c0_i32_0 : i32, i32, i32
  }
  func.func @transform_2(%arg0: i32, %arg1: i32) -> (i32, i32, i32) {
    %c1_i32 = arith.constant 1 : i32
    %0 = arith.muli %arg0, %c1_i32 : i32
    %1 = arith.addi %0, %arg1 : i32
    %c0_i32 = arith.constant 0 : i32
    %c0_i32_0 = arith.constant 0 : i32
    %c0_i32_1 = arith.constant 0 : i32
    return %1, %c0_i32, %c0_i32_0 : i32, i32, i32
  }
  func.func @transform_3(%arg0: i32, %arg1: i32) -> (i32, i32) {
    %c0_i32 = arith.constant 0 : i32
    %c0_i32_0 = arith.constant 0 : i32
    %c0_i32_1 = arith.constant 0 : i32
    return %c0_i32, %c0_i32_0 : i32, i32
  }
  func.func @transform_4(%arg0: i32, %arg1: i32) -> (i32, i32) {
    %c0_i32 = arith.constant 0 : i32
    %c0_i32_0 = arith.constant 0 : i32
    %c0_i32_1 = arith.constant 0 : i32
    return %c0_i32, %c0_i32_0 : i32, i32
  }
  func.func @transform_5(%arg0: i32, %arg1: i32) -> (i32, i32, i32, i32) {
    %c0_i32 = arith.constant 0 : i32
    %c0_i32_0 = arith.constant 0 : i32
    %c0_i32_1 = arith.constant 0 : i32
    return %arg0, %arg1, %c0_i32, %c0_i32_0 : i32, i32, i32, i32
  }
}

module attributes {stable_mosaic.version = 11 : i64} {
  func.func @_apply_kernel(%arg0: i32, %arg1: i32, %arg2: memref<1x4x16xf32, #tpu.memory_space<vmem>>, %arg3: memref<1x4x1xf32, #tpu.memory_space<vmem>>, %arg4: memref<1x4x1xf32, #tpu.memory_space<vmem>>, %arg5: memref<4x3xf32, #tpu.memory_space<vmem>>, %arg6: memref<8x4xf32, #tpu.memory_space<vmem>>, %arg7: memref<8x1xf32, #tpu.memory_space<vmem>>, %arg8: memref<8x1xf32, #tpu.memory_space<vmem>>, %arg9: memref<1x8x16xf32, #tpu.memory_space<vmem>>) attributes {dimension_semantics = [#tpu.dimension_semantics<parallel>, #tpu.dimension_semantics<parallel>], iteration_bounds = array<i64: 2, 1>, scalar_prefetch = 0 : i64, scratch_operands = 0 : i64, tpu.core_type = #tpu.core_type<tc>, window_params = [{transform_indices = @transform_0, window_bounds = array<i64: 1, 4, 16>}, {transform_indices = @transform_1, window_bounds = array<i64: 1, 4, 1>}, {transform_indices = @transform_2, window_bounds = array<i64: 1, 4, 1>}, {pipeline_mode = #tpu.pipeline_mode<synchronous>, transform_indices = @transform_3, window_bounds = array<i64: 4, 3>}, {pipeline_mode = #tpu.pipeline_mode<synchronous>, transform_indices = @transform_4, window_bounds = array<i64: 8, 4>}, {pipeline_mode = #tpu.pipeline_mode<synchronous>, transform_indices = @transform_5, window_bounds = array<i64: 8, 1>}, {pipeline_mode = #tpu.pipeline_mode<synchronous>, transform_indices = @transform_6, window_bounds = array<i64: 8, 1>}, {transform_indices = @transform_7, window_bounds = array<i64: 1, 8, 16>}]} {
    %c0 = arith.constant 0 : index
    %c0_0 = arith.constant 0 : index
    %c0_1 = arith.constant 0 : index
    %0 = vector.load %arg2[%c0, %c0_0, %c0_1] : memref<1x4x16xf32, #tpu.memory_space<vmem>>, vector<1x4x16xf32>
    %1 = vector.shape_cast %0 : vector<1x4x16xf32> to vector<4x16xf32>
    %c0_2 = arith.constant 0 : index
    %c0_3 = arith.constant 0 : index
    %c0_4 = arith.constant 0 : index
    %2 = vector.load %arg3[%c0_2, %c0_3, %c0_4] : memref<1x4x1xf32, #tpu.memory_space<vmem>>, vector<1x4x1xf32>
    %3 = vector.shape_cast %2 : vector<1x4x1xf32> to vector<4x1xf32>
    %c0_5 = arith.constant 0 : index
    %c0_6 = arith.constant 0 : index
    %c0_7 = arith.constant 0 : index
    %4 = vector.load %arg4[%c0_5, %c0_6, %c0_7] : memref<1x4x1xf32, #tpu.memory_space<vmem>>, vector<1x4x1xf32>
    %5 = vector.shape_cast %4 : vector<1x4x1xf32> to vector<4x1xf32>
    %c0_8 = arith.constant 0 : index
    %c0_9 = arith.constant 0 : index
    %6 = vector.load %arg5[%c0_8, %c0_9] : memref<4x3xf32, #tpu.memory_space<vmem>>, vector<4x3xf32>
    %c0_10 = arith.constant 0 : index
    %c0_11 = arith.constant 0 : index
    %7 = vector.load %arg6[%c0_10, %c0_11] : memref<8x4xf32, #tpu.memory_space<vmem>>, vector<8x4xf32>
    %8 = vector.extract_strided_slice %1 {offsets = [0, 0], sizes = [4, 15], strides = [1, 1]} : vector<4x16xf32> to vector<4x15xf32>
    %9 = tpu.concatenate %3, %8 in 1 : vector<4x1xf32>, vector<4x15xf32> -> vector<4x16xf32>
    %10 = vector.extract_strided_slice %1 {offsets = [0, 1], sizes = [4, 15], strides = [1, 1]} : vector<4x16xf32> to vector<4x15xf32>
    %11 = tpu.concatenate %10, %5 in 1 : vector<4x15xf32>, vector<4x1xf32> -> vector<4x16xf32>
    %12 = vector.extract_strided_slice %6 {offsets = [0, 0], sizes = [4, 1], strides = [1, 1]} : vector<4x3xf32> to vector<4x1xf32>
    %13 = vector.extract_strided_slice %6 {offsets = [0, 1], sizes = [4, 1], strides = [1, 1]} : vector<4x3xf32> to vector<4x1xf32>
    %14 = vector.extract_strided_slice %6 {offsets = [0, 2], sizes = [4, 1], strides = [1, 1]} : vector<4x3xf32> to vector<4x1xf32>
    %15 = vector.broadcast %12 : vector<4x1xf32> to vector<4x16xf32>
    %16 = arith.mulf %15, %9 : vector<4x16xf32>
    %17 = vector.broadcast %13 : vector<4x1xf32> to vector<4x16xf32>
    %18 = arith.mulf %17, %1 : vector<4x16xf32>
    %19 = arith.addf %16, %18 : vector<4x16xf32>
    %20 = vector.broadcast %14 : vector<4x1xf32> to vector<4x16xf32>
    %21 = arith.mulf %20, %11 : vector<4x16xf32>
    %22 = arith.addf %19, %21 : vector<4x16xf32>
    %cst = arith.constant dense<0.000000e+00> : vector<8x16xf32>
    %23 = tpu.matmul %7, %22, %cst {dimension_numbers = #tpu.dot_dimension_numbers<[1], [0], [0], [1], [0, 0, 1, 1], [], []>} : vector<8x4xf32>, vector<4x16xf32>, vector<8x16xf32> -> vector<8x16xf32>
    %c0_12 = arith.constant 0 : index
    %c0_13 = arith.constant 0 : index
    %24 = vector.load %arg7[%c0_12, %c0_13] : memref<8x1xf32, #tpu.memory_space<vmem>>, vector<8x1xf32>
    %25 = vector.broadcast %24 : vector<8x1xf32> to vector<8x16xf32>
    %26 = arith.mulf %23, %25 : vector<8x16xf32>
    %c0_14 = arith.constant 0 : index
    %c0_15 = arith.constant 0 : index
    %27 = vector.load %arg8[%c0_14, %c0_15] : memref<8x1xf32, #tpu.memory_space<vmem>>, vector<8x1xf32>
    %28 = vector.broadcast %27 : vector<8x1xf32> to vector<8x16xf32>
    %29 = arith.addf %26, %28 : vector<8x16xf32>
    %cst_16 = arith.constant 0.000000e+00 : f32
    %30 = vector.broadcast %cst_16 : f32 to vector<8x16xf32>
    %31 = arith.maximumf %29, %30 : vector<8x16xf32>
    %32 = vector.shape_cast %31 : vector<8x16xf32> to vector<1x8x16xf32>
    %c0_17 = arith.constant 0 : index
    %c0_18 = arith.constant 0 : index
    %c0_19 = arith.constant 0 : index
    %33 = vector.load %arg9[%c0_17, %c0_18, %c0_19] : memref<1x8x16xf32, #tpu.memory_space<vmem>>, vector<1x8x16xf32>
    tpu.vector_store %arg9[%c0_17, %c0_18, %c0_19], %32 {strides = array<i32>} : memref<1x8x16xf32, #tpu.memory_space<vmem>>, vector<1x8x16xf32>,
    return
  }
  func.func @transform_0(%arg0: i32, %arg1: i32) -> (i32, i32, i32) {
    %c0_i32 = arith.constant 0 : i32
    %c0_i32_0 = arith.constant 0 : i32
    return %arg0, %c0_i32, %arg1 : i32, i32, i32
  }
  func.func @transform_1(%arg0: i32, %arg1: i32) -> (i32, i32, i32) {
    %c1_i32 = arith.constant 1 : i32
    %0 = arith.muli %arg0, %c1_i32 : i32
    %1 = arith.addi %0, %arg1 : i32
    %c0_i32 = arith.constant 0 : i32
    %c0_i32_0 = arith.constant 0 : i32
    %c0_i32_1 = arith.constant 0 : i32
    return %1, %c0_i32, %c0_i32_0 : i32, i32, i32
  }
  func.func @transform_2(%arg0: i32, %arg1: i32) -> (i32, i32, i32) {
    %c1_i32 = arith.constant 1 : i32
    %0 = arith.muli %arg0, %c1_i32 : i32
    %1 = arith.addi %0, %arg1 : i32
    %c0_i32 = arith.constant 0 : i32
    %c0_i32_0 = arith.constant 0 : i32
    %c0_i32_1 = arith.constant 0 : i32
    return %1, %c0_i32, %c0_i32_0 : i32, i32, i32
  }
  func.func @transform_3(%arg0: i32, %arg1: i32) -> (i32, i32) {
    %c0_i32 = arith.constant 0 : i32
    %c0_i32_0 = arith.constant 0 : i32
    %c0_i32_1 = arith.constant 0 : i32
    return %c0_i32, %c0_i32_0 : i32, i32
  }
  func.func @transform_4(%arg0: i32, %arg1: i32) -> (i32, i32) {
    %c0_i32 = arith.constant 0 : i32
    %c0_i32_0 = arith.constant 0 : i32
    %c0_i32_1 = arith.constant 0 : i32
    return %c0_i32, %c0_i32_0 : i32, i32
  }
  func.func @transform_5(%arg0: i32, %arg1: i32) -> (i32, i32) {
    %c0_i32 = arith.constant 0 : i32
    %c0_i32_0 = arith.constant 0 : i32
    %c0_i32_1 = arith.constant 0 : i32
    return %c0_i32, %c0_i32_0 : i32, i32
  }
  func.func @transform_6(%arg0: i32, %arg1: i32) -> (i32, i32) {
    %c0_i32 = arith.constant 0 : i32
    %c0_i32_0 = arith.constant 0 : i32
    %c0_i32_1 = arith.constant 0 : i32
    return %c0_i32, %c0_i32_0 : i32, i32
  }
  func.func @transform_7(%arg0: i32, %arg1: i32) -> (i32, i32, i32) {
    %c0_i32 = arith.constant 0 : i32
    %c0_i32_0 = arith.constant 0 : i32
    return %arg0, %c0_i32, %arg1 : i32, i32, i32
  }
}

</mosaic_0001>

<llo_original>
// kernel: depthwise_separable_conv.2
$region0: #{depthwise_separable_conv.2}
  #allocation0 [shape = 'u32[]', space=smem, size = 0x4, offset = 0x4, fixed_abs, tag = 'smem constant byte address 0x4 - core index']
  #allocation1 [shape = 'u32[72,128]{1,0:T(1,128)}', space=vmem, size = 0x9000, scoped, tag = 'internal scratch']
  %s0 = inlined_call_operand.vmem [shape: f32[2,4,16], index: 0, kind: input, shape index: {}]
  %s1 = inlined_call_operand.vmem [shape: f32[2,4,1], index: 1, kind: input, shape index: {}, may-alias: {1,2}]
  %s2 = inlined_call_operand.vmem [shape: f32[2,4,1], index: 2, kind: input, shape index: {}, may-alias: {1,2}]
  %s3 = inlined_call_operand.vmem [shape: f32[4,3], index: 3, kind: input, shape index: {}]
  %s4 = inlined_call_operand.vmem [shape: f32[8,4], index: 4, kind: input, shape index: {}]
  %s5 = inlined_call_operand.vmem [shape: f32[2,1,8,2], index: 5, kind: output, shape index: {}]
  %s6 = sld [smem:[#allocation0]]
  $region53: #{depthwise_separable_conv.2} parent=0
    _
  %s8 = ssub.s32 1, %s6
  %s9 = scalar_select 0, %s8, %s6
  loop: start=0, step=1, limit=4
  $region2: #{depthwise_separable_conv.2} parent=0 // loop_pre_header
    _
  $region3: #{depthwise_separable_conv.2} parent=0 // loop_header
    %s11 = sphi 0, %s15
    %p12 = scmp.ge.s32.totalorder %s11, 4
    %s18 = sphi 0, %s30
    %s19 = sphi 0, %s26
    %s20 = sphi 0, %s18
    %s21 = sphi 0, %s19
    %s22 = sphi 0, %s20
    %s23 = sphi 0, %s21
    %s35 = sphi 0, %s37
    %s38 = sphi 0, %s35
    %s39 = sphi 0, %s38
    %s55 = sphi 0, %s39
    %s63 = sphi 0, %s65
    %s66 = sphi 0, %s63
    %s67 = sphi 0, %s66
    %s83 = sphi 0, %s67
    %s91 = sphi 0, %s93
    %s94 = sphi 0, %s91
    %s95 = sphi 0, %s94
    %s111 = sphi 0, %s95
    %s115 = sphi 0, %s115
    %s117 = sphi 0, %s115
    %s118 = sphi 0, %s117
    %s132 = sphi 0, %s118
    %s136 = sphi 0, %s136
    %s138 = sphi 0, %s136
    %s139 = sphi 0, %s138
    %s153 = sphi 0, %s139
    %s161 = sphi 0, %s163
    %s164 = sphi 0, %s161
    %s165 = sphi 0, %s164
    %s181 = sphi 0, %s165
  $region4: #{depthwise_separable_conv.2} parent=0 // loop_header_branch
    %14 = sbr.rel (%p12) target = $region8
  $region5: #{depthwise_separable_conv.2} parent=0 // loop_body
    %s16 = ssub.s32 %s11, 1
    %s17 = ssub.s32 %s11, 2
    %s24 = sadd.s32 1, %s19
    %p25 = scmp.ge.s32.totalorder %s24, 1
    %s26 = scalar_select %p25, 0, %s24
    %s27 = sadd.s32 1, %s18
    %s28 = scalar_select %p25, %s27, %s18
    %p29 = scmp.ge.s32.totalorder %s28, 2
    %s30 = scalar_select %p29, 0, %s28
    %s31 = ssub.s32 %s18, %s30
    %s32 = ssub.s32 %s19, %s26
    %s33 = sor.u32 %s31, %s32
    %p34 = scmp.eq.s32.totalorder %s33, 0
    %s36 = sadd.s32 %s35, 1
    %s37 = scalar_select %p34, %s35, %s36
    %p40 = pneg %p34
    %p41 = scmp.eq.s32.totalorder %s11, 1
    %p42 = por %p40, %p41
    %p43 = scmp.ne.s32.totalorder %s35, %s38
    %p44 = scmp.eq.s32.totalorder %s11, 0
    %p45 = por %p43, %p44
    %p46 = scmp.ne.s32.totalorder %s35, %s38
    %p47 = scmp.eq.s32.totalorder %s16, 1
    %p48 = por %p46, %p47
    %p49 = scmp.ne.s32.totalorder %s38, %s39
    %p50 = scmp.eq.s32.totalorder %s16, 0
    %p51 = por %p49, %p50
    %p52 = scmp.ne.s32.totalorder %s38, %s39
    %p53 = scmp.eq.s32.totalorder %s17, 1
    %p54 = por %p52, %p53
    %p56 = scmp.ne.s32.totalorder %s39, %s55
    %p57 = scmp.eq.s32.totalorder %s17, 0
    %p58 = por %p56, %p57
    %s59 = sadd.s32 %s18, %s19
    %s60 = sadd.s32 %s30, %s26
    %s61 = ssub.s32 %s59, %s60
    %p62 = scmp.eq.s32.totalorder %s61, 0
    %s64 = sadd.s32 %s63, 1
    %s65 = scalar_select %p62, %s63, %s64
    %p68 = pneg %p62
    %p69 = scmp.eq.s32.totalorder %s11, 1
    %p70 = por %p68, %p69
    %p71 = scmp.ne.s32.totalorder %s63, %s66
    %p72 = scmp.eq.s32.totalorder %s11, 0
    %p73 = por %p71, %p72
    %p74 = scmp.ne.s32.totalorder %s63, %s66
    %p75 = scmp.eq.s32.totalorder %s16, 1
    %p76 = por %p74, %p75
    %p77 = scmp.ne.s32.totalorder %s66, %s67
    %p78 = scmp.eq.s32.totalorder %s16, 0
    %p79 = por %p77, %p78
    %p80 = scmp.ne.s32.totalorder %s66, %s67
    %p81 = scmp.eq.s32.totalorder %s17, 1
    %p82 = por %p80, %p81
    %p84 = scmp.ne.s32.totalorder %s67, %s83
    %p85 = scmp.eq.s32.totalorder %s17, 0
    %p86 = por %p84, %p85
    %s87 = sadd.s32 %s18, %s19
    %s88 = sadd.s32 %s30, %s26
    %s89 = ssub.s32 %s87, %s88
    %p90 = scmp.eq.s32.totalorder %s89, 0
    %s92 = sadd.s32 %s91, 1
    %s93 = scalar_select %p90, %s91, %s92
    %p96 = pneg %p90
    %p97 = scmp.eq.s32.totalorder %s11, 1
    %p98 = por %p96, %p97
    %p99 = scmp.ne.s32.totalorder %s91, %s94
    %p100 = scmp.eq.s32.totalorder %s11, 0
    %p101 = por %p99, %p100
    %p102 = scmp.ne.s32.totalorder %s91, %s94
    %p103 = scmp.eq.s32.totalorder %s16, 1
    %p104 = por %p102, %p103
    %p105 = scmp.ne.s32.totalorder %s94, %s95
    %p106 = scmp.eq.s32.totalorder %s16, 0
    %p107 = por %p105, %p106
    %p108 = scmp.ne.s32.totalorder %s94, %s95
    %p109 = scmp.eq.s32.totalorder %s17, 1
    %p110 = por %p108, %p109
    %p112 = scmp.ne.s32.totalorder %s95, %s111
    %p113 = scmp.eq.s32.totalorder %s17, 0
    %p114 = por %p112, %p113
    %s116 = sadd.s32 %s115, 1
    %p119 = scmp.eq.s32.totalorder %s11, 1
    %p120 = scmp.ne.s32.totalorder %s115, %s117
    %p121 = scmp.eq.s32.totalorder %s11, 0
    %p122 = por %p120, %p121
    %p123 = scmp.ne.s32.totalorder %s115, %s117
    %p124 = scmp.eq.s32.totalorder %s16, 1
    %p125 = por %p123, %p124
    %p126 = scmp.ne.s32.totalorder %s117, %s118
    %p127 = scmp.eq.s32.totalorder %s16, 0
    %p128 = por %p126, %p127
    %p129 = scmp.ne.s32.totalorder %s117, %s118
    %p130 = scmp.eq.s32.totalorder %s17, 1
    %p131 = por %p129, %p130
    %p133 = scmp.ne.s32.totalorder %s118, %s132
    %p134 = scmp.eq.s32.totalorder %s17, 0
    %p135 = por %p133, %p134
    %s137 = sadd.s32 %s136, 1
    %p140 = scmp.eq.s32.totalorder %s11, 1
    %p141 = scmp.ne.s32.totalorder %s136, %s138
    %p142 = scmp.eq.s32.totalorder %s11, 0
    %p143 = por %p141, %p142
    %p144 = scmp.ne.s32.totalorder %s136, %s138
    %p145 = scmp.eq.s32.totalorder %s16, 1
    %p146 = por %p144, %p145
    %p147 = scmp.ne.s32.totalorder %s138, %s139
    %p148 = scmp.eq.s32.totalorder %s16, 0
    %p149 = por %p147, %p148
    %p150 = scmp.ne.s32.totalorder %s138, %s139
    %p151 = scmp.eq.s32.totalorder %s17, 1
    %p152 = por %p150, %p151
    %p154 = scmp.ne.s32.totalorder %s139, %s153
    %p155 = scmp.eq.s32.totalorder %s17, 0
    %p156 = por %p154, %p155
    %s157 = ssub.s32 %s18, %s30
    %s158 = ssub.s32 %s19, %s26
    %s159 = sor.u32 %s157, %s158
    %p160 = scmp.eq.s32.totalorder %s159, 0
    %s162 = sadd.s32 %s161, 1
    %s163 = scalar_select %p160, %s161, %s162
    %p166 = pneg %p160
    %p167 = scmp.eq.s32.totalorder %s11, 1
    %p168 = por %p166, %p167
    %p169 = scmp.ne.s32.totalorder %s161, %s164
    %p170 = scmp.eq.s32.totalorder %s11, 0
    %p171 = por %p169, %p170
    %p172 = scmp.ne.s32.totalorder %s161, %s164
    %p173 = scmp.eq.s32.totalorder %s16, 1
    %p174 = por %p172, %p173
    %p175 = scmp.ne.s32.totalorder %s164, %s165
    %p176 = scmp.eq.s32.totalorder %s16, 0
    %p177 = por %p175, %p176
    %p178 = scmp.ne.s32.totalorder %s164, %s165
    %p179 = scmp.eq.s32.totalorder %s17, 1
    %p180 = por %p178, %p179
    %p182 = scmp.ne.s32.totalorder %s165, %s181
    %p183 = scmp.eq.s32.totalorder %s17, 0
    %p184 = por %p182, %p183
    %p185 = scmp.le.s32.totalorder 1, %s11
    %p186 = scmp.lt.s32.totalorder %s11, 3
    %p187 = pnand %p185, %p186
    %p188 = pneg %p187
    // Predicated region
    $region9: #{depthwise_separable_conv.2} parent=5 // pred_check
      _
    $region10: #{depthwise_separable_conv.2} parent=5 // pred_check_branch
      %190 = sbr.rel (%p187) target = $region12
    $region11: #{depthwise_separable_conv.2} parent=5 // pred_region
      %s191 = ssub.s32 %s11, 1
      // Predicated region
      $region13: #{depthwise_separable_conv.2} parent=11 // pred_check
        %p192 = pneg %p128
      $region14: #{depthwise_separable_conv.2} parent=11 // pred_check_branch
        %194 = sbr.rel (%p192) target = $region16
      $region15: #{depthwise_separable_conv.2} parent=11 // pred_region
        _
      $region16: #{depthwise_separable_conv.2} parent=11 // pred_fallthru
        _
      // Predicated region
      $region17: #{depthwise_separable_conv.2} parent=11 // pred_check
        %p195 = pneg %p149
      $region18: #{depthwise_separable_conv.2} parent=11 // pred_check_branch
        %197 = sbr.rel (%p195) target = $region20
      $region19: #{depthwise_separable_conv.2} parent=11 // pred_region
        _
      $region20: #{depthwise_separable_conv.2} parent=11 // pred_fallthru
        _
    $region12: #{depthwise_separable_conv.2} parent=5 // pred_fallthru
      _
    %p198 = scmp.lt.s32.totalorder %s11, 2
    // Predicated region
    $region21: #{depthwise_separable_conv.2} parent=5 // pred_check
      %p199 = pneg %p198
    $region22: #{depthwise_separable_conv.2} parent=5 // pred_check_branch
      %201 = sbr.rel (%p199) target = $region24
    $region23: #{depthwise_separable_conv.2} parent=5 // pred_region
      // Predicated region
      $region25: #{depthwise_separable_conv.2} parent=23 // pred_check
        %p202 = pneg %p45
      $region26: #{depthwise_separable_conv.2} parent=23 // pred_check_branch
        %204 = sbr.rel (%p202) target = $region28
      $region27: #{depthwise_separable_conv.2} parent=23 // pred_region
        %p205 = scmp.lt.s32.totalorder %s18, 1
        %s206 = scalar_select %p205, %s18, 1
        %p207 = scmp.lt.s32.totalorder %s19, 0
        %s208 = scalar_select %p207, %s19, 0
        %s209 = sadd.s32 %s208, %s206
        %s210 = smul.addr %s209, 4
        %s211 = scalar_lea.vmem %s0, %s210
      $region28: #{depthwise_separable_conv.2} parent=23 // pred_fallthru
        _
      // Predicated region
      $region29: #{depthwise_separable_conv.2} parent=23 // pred_check
        %p212 = pneg %p73
      $region30: #{depthwise_separable_conv.2} parent=23 // pred_check_branch
        %214 = sbr.rel (%p212) target = $region32
      $region31: #{depthwise_separable_conv.2} parent=23 // pred_region
        %s215 = sadd.s32 %s18, %s19
        %p216 = scmp.lt.s32.totalorder %s215, 1
        %s217 = scalar_select %p216, %s215, 1
        %s218 = smul.addr %s217, 4
        %s219 = scalar_lea.vmem %s1, %s218
        %s220 = sadd.s32 %s18, %s19
      $region32: #{depthwise_separable_conv.2} parent=23 // pred_fallthru
        _
      // Predicated region
      $region33: #{depthwise_separable_conv.2} parent=23 // pred_check
        %p221 = pneg %p101
      $region34: #{depthwise_separable_conv.2} parent=23 // pred_check_branch
        %223 = sbr.rel (%p221) target = $region36
      $region35: #{depthwise_separable_conv.2} parent=23 // pred_region
        %s224 = sadd.s32 %s18, %s19
        %p225 = scmp.lt.s32.totalorder %s224, 1
        %s226 = scalar_select %p225, %s224, 1
        %s227 = smul.addr %s226, 4
        %s228 = scalar_lea.vmem %s2, %s227
        %s229 = sadd.s32 %s18, %s19
      $region36: #{depthwise_separable_conv.2} parent=23 // pred_fallthru
        _
    $region24: #{depthwise_separable_conv.2} parent=5 // pred_fallthru
      _
    %p230 = scmp.le.s32.totalorder 1, %s11
    %p231 = scmp.lt.s32.totalorder %s11, 3
    %p232 = pnand %p230, %p231
    %p233 = pneg %p232
    // Predicated region
    $region37: #{depthwise_separable_conv.2} parent=5 // pred_check
      _
    $region38: #{depthwise_separable_conv.2} parent=5 // pred_check_branch
      %235 = sbr.rel (%p232) target = $region40
    $region39: #{depthwise_separable_conv.2} parent=5 // pred_region
      %s236 = ssub.s32 %s11, 1
      %p237 = scmp.lt.s32.totalorder %s20, 1
      %s238 = scalar_select %p237, %s20, 1
      %p239 = scmp.lt.s32.totalorder %s21, 0
      %s240 = scalar_select %p239, %s21, 0
      %s241 = sadd.s32 %s240, %s238
      %s242 = smul.addr %s241, 4
      %s243 = scalar_lea.vmem %s0, %s242
      %p244 = pneg %p51
      %p245 = pneg %p48
      %s246 = sadd.s32 %s20, %s21
      %p247 = scmp.lt.s32.totalorder %s246, 1
      %s248 = scalar_select %p247, %s246, 1
      %s249 = smul.addr %s248, 4
      %s250 = scalar_lea.vmem %s1, %s249
      %p251 = pneg %p79
      %p252 = pneg %p76
      %s253 = sadd.s32 %s20, %s21
      %p254 = scmp.lt.s32.totalorder %s253, 1
      %s255 = scalar_select %p254, %s253, 1
      %s256 = smul.addr %s255, 4
      %s257 = scalar_lea.vmem %s2, %s256
      %p258 = pneg %p107
      %p259 = pneg %p104
      %p260 = pneg %p128
      %p261 = pneg %p125
      %p262 = pneg %p149
      %p263 = pneg %p146
      %p264 = pneg %p177
      %p265 = pneg %p174
      %p266 = scmp.lt.s32.totalorder %s20, 1
      %s267 = scalar_select %p266, %s20, 1
      %p268 = scmp.lt.s32.totalorder %s21, 0
      %s269 = scalar_select %p268, %s21, 0
      %s270 = sadd.s32 %s269, %s267
      %s271 = smul.addr %s270, 8
      %s272 = scalar_lea.vmem %s5, %s271
      %p273 = scmp.lt.s32.totalorder %s20, 1
      %s274 = scalar_select %p273, %s20, 1
      %p275 = scmp.lt.s32.totalorder %s21, 0
      %s276 = scalar_select %p275, %s21, 0
      %s277 = sadd.s32 %s276, %s274
      %s278 = smul.addr %s277, 4
      %s279 = scalar_lea.vmem %s0, %s278
      %s280 = sadd.s32 %s20, %s21
      %p281 = scmp.lt.s32.totalorder %s280, 1
      %s282 = scalar_select %p281, %s280, 1
      %s283 = smul.addr %s282, 4
      %s284 = scalar_lea.vmem %s1, %s283
      %s285 = sadd.s32 %s20, %s21
      %s286 = sadd.s32 %s20, %s21
      %p287 = scmp.lt.s32.totalorder %s286, 1
      %s288 = scalar_select %p287, %s286, 1
      %s289 = smul.addr %s288, 4
      %s290 = scalar_lea.vmem %s2, %s289
      %s291 = sadd.s32 %s20, %s21
      %p292 = scmp.lt.s32.totalorder %s20, 1
      %s293 = scalar_select %p292, %s20, 1
      %p294 = scmp.lt.s32.totalorder %s21, 0
      %s295 = scalar_select %p294, %s21, 0
      %s296 = sadd.s32 %s295, %s293
      %s297 = smul.addr %s296, 8
      %s298 = scalar_lea.vmem %s5, %s297
      %v299 = vld [vmem:[%s279] sm:$0xf]
      %v300 = vld [vmem:[%s284] sm:$0xf]
      %v301 = vld [vmem:[%s290] sm:$0xf]
      %v302 = vld [vmem:[%s3] sm:$0xf]
      %v303 = vld [vmem:[%s4] sm:$0xff]
      %305 = vrot.lane.b32.xlu0 %v299, 1
      %v306 = vpop.permute.xlu0 %305
      %vm308 = vcmask 7168
      %v309 = vsel %vm308, %v300, %v306
      %310 = vrot.lane.b32.xlu0 %v299, 127
      %v311 = vpop.permute.xlu0 %310
      %314 = vrot.lane.b32.xlu0 %v301, 15
      %v315 = vpop.permute.xlu0 %314
      %vm317 = vcmask 121856
      %v318 = vsel %vm317, %v311, %v315
      %320 = vset.pattern.permute.xlu0 0
      %321 = vperm.xlu0 %320, %v302
      %v322 = vpop.permute.xlu0 %321
      %v324 = vmul.f32 %v322, %v309
      %325 = vset.pattern.permute.xlu0 1
      %326 = vperm.xlu0 %325, %v302
      %v327 = vpop.permute.xlu0 %326
      %v329 = vmul.f32 %v327, %v299
      %v330 = vadd.f32 %v324, %v329
      %331 = vset.pattern.permute.xlu0 2
      %332 = vperm.xlu0 %331, %v302
      %v333 = vpop.permute.xlu0 %332
      %v335 = vmul.f32 %v333, %v318
      %v336 = vadd.f32 %v330, %v335
      %vm337 = vcmask 31744
      %v339 = vsel %vm337, %v303, 0
      %vm341 = vcmask 1043456
      %v343 = vsel %vm341, %v336, 0
      %345 = vmatpush.msra.mxu0 0.0
      %346 = vmatpush.msra.mxu0 0.0
      %347 = vmatpush.msra.mxu0 0.0
      %348 = vmatpush.msra.mxu0 0.0
      %349 = vmatpush.msra.mxu0 0.0
      %350 = vmatpush.msra.mxu0 0.0
      %351 = vmatpush.msra.mxu0 0.0
      %352 = vmatpush.msra.mxu0 0.0
      %353 = vmatpush.msra.mxu0 0.0
      %354 = vmatpush.msra.mxu0 0.0
      %355 = vmatpush.msra.mxu0 0.0
      %356 = vmatpush.msra.mxu0 0.0
      %357 = vmatpush.msra.mxu0 0.0
      %358 = vmatpush.msra.mxu0 0.0
      %359 = vmatpush.msra.mxu0 0.0
      %360 = vmatpush.msra.mxu0 %v343
      %361 = vmatmul.f32.gmra.mxu0 %v339
      %v362 = vpop.f32.mrf.mxu0
      %v363 = vadd.f32 0.0, %v362
      %364 = vdwg.mxu0
      %vm365 = vcmask 130048
      %v366 = vsel %vm365, %v363, 0.0
      %367 = vadd.xlane.f32.xlu0 %v366
      %v368 = vpop.xlane.xlu0 %367
      %v369 = vmul.f32 %v363, %v363
      %v370 = vsel %vm365, %v369, 0.0
      %371 = vadd.xlane.f32.xlu0 %v370
      %v372 = vpop.xlane.xlu0 %371
      %v373 = vsel %vm308, %v368, %v372
      %vm374 = vcmask 15360
      %375 = vst.msk [vmem:[%s298] sm:$0xff] %vm374, %v373
      %p376 = scmp.lt.s32.totalorder %s20, 1
      %s377 = scalar_select %p376, %s20, 1
      %p378 = scmp.lt.s32.totalorder %s21, 0
      %s379 = scalar_select %p378, %s21, 0
      %s380 = sadd.s32 %s379, %s377
      %s381 = smul.addr %s380, 8
      %s382 = scalar_lea.vmem %s5, %s381
      // Predicated region
      $region41: #{depthwise_separable_conv.2} parent=39 // pred_check
        %p383 = pneg %p174
      $region42: #{depthwise_separable_conv.2} parent=39 // pred_check_branch
        %385 = sbr.rel (%p383) target = $region44
      $region43: #{depthwise_separable_conv.2} parent=39 // pred_region
        _
      $region44: #{depthwise_separable_conv.2} parent=39 // pred_fallthru
        _
    $region40: #{depthwise_separable_conv.2} parent=5 // pred_fallthru
      _
    %p386 = scmp.le.s32.totalorder 2, %s11
    // Predicated region
    $region45: #{depthwise_separable_conv.2} parent=5 // pred_check
      %p387 = pneg %p386
    $region46: #{depthwise_separable_conv.2} parent=5 // pred_check_branch
      %389 = sbr.rel (%p387) target = $region48
    $region47: #{depthwise_separable_conv.2} parent=5 // pred_region
      %s390 = ssub.s32 %s11, 2
      // Predicated region
      $region49: #{depthwise_separable_conv.2} parent=47 // pred_check
        %p391 = pneg %p180
      $region50: #{depthwise_separable_conv.2} parent=47 // pred_check_branch
        %393 = sbr.rel (%p391) target = $region52
      $region51: #{depthwise_separable_conv.2} parent=47 // pred_region
        %p394 = scmp.lt.s32.totalorder %s22, 1
        %s395 = scalar_select %p394, %s22, 1
        %p396 = scmp.lt.s32.totalorder %s23, 0
        %s397 = scalar_select %p396, %s23, 0
        %s398 = sadd.s32 %s397, %s395
        %s399 = smul.addr %s398, 8
        %s400 = scalar_lea.vmem %s5, %s399
      $region52: #{depthwise_separable_conv.2} parent=47 // pred_fallthru
        _
    $region48: #{depthwise_separable_conv.2} parent=5 // pred_fallthru
      _
  $region6: #{depthwise_separable_conv.2} parent=0 // loop_footer
    %s15 = sadd.s32 1, %s11
  $region7: #{depthwise_separable_conv.2} parent=0 // loop_footer_branch
    %10 = sbr.rel target = $region3
  $region8: #{depthwise_separable_conv.2} parent=0 // loop_exit
    _

// kernel: depthwise_separable_conv.3
$region0: #{depthwise_separable_conv.3}
  #allocation0 [shape = 'u32[]', space=smem, size = 0x4, offset = 0x4, fixed_abs, tag = 'smem constant byte address 0x4 - core index']
  #allocation1 [shape = 'u32[72,128]{1,0:T(1,128)}', space=vmem, size = 0x9000, scoped, tag = 'internal scratch']
  %s0 = inlined_call_operand.vmem [shape: f32[2,4,16], index: 0, kind: input, shape index: {}]
  %s1 = inlined_call_operand.vmem [shape: f32[2,4,1], index: 1, kind: input, shape index: {}, may-alias: {1,2}]
  %s2 = inlined_call_operand.vmem [shape: f32[2,4,1], index: 2, kind: input, shape index: {}, may-alias: {1,2}]
  %s3 = inlined_call_operand.vmem [shape: f32[4,3], index: 3, kind: input, shape index: {}]
  %s4 = inlined_call_operand.vmem [shape: f32[8,4], index: 4, kind: input, shape index: {}]
  %s5 = inlined_call_operand.vmem [shape: f32[8,1], index: 5, kind: input, shape index: {}]
  %s6 = inlined_call_operand.vmem [shape: f32[8,1], index: 6, kind: input, shape index: {}]
  %s7 = inlined_call_operand.hbm [shape: f32[2,8,16], index: 7, kind: output, shape index: {}]
  %s8 = sld [smem:[#allocation0]]
  $region61: #{depthwise_separable_conv.3} parent=0
    _
  %s10 = ssub.s32 1, %s8
  %s11 = scalar_select 0, %s10, %s8
  $region1: #{depthwise_separable_conv.3} parent=0
    #allocation2 [shape = 'u8[8192]{0}', space=vmem, size = 0x2000, scoped, tag = 'output window, operand 0']
    #allocation3 [shape = 's32[2]{0}', space=sflag, size = 0x8, scoped, tag = 'scoped memory for depthwise_separable_conv.3']
    %12 = vsyncpa [#allocation3], 0
    %s13 = scalar_lea.sflag [#allocation3], 1
    %14 = vsyncpa %s13, 0
    loop: start=0, step=1, limit=4
    $region2: #{depthwise_separable_conv.3} parent=1 // loop_pre_header
      _
    $region3: #{depthwise_separable_conv.3} parent=1 // loop_header
      %s16 = sphi 0, %s20
      %p17 = scmp.ge.s32.totalorder %s16, 4
      %s23 = sphi 0, %s35
      %s24 = sphi 0, %s31
      %s25 = sphi 0, %s23
      %s26 = sphi 0, %s24
      %s27 = sphi 0, %s25
      %s28 = sphi 0, %s26
      %s40 = sphi 0, %s42
      %s43 = sphi 0, %s40
      %s44 = sphi 0, %s43
      %s60 = sphi 0, %s44
      %s68 = sphi 0, %s70
      %s71 = sphi 0, %s68
      %s72 = sphi 0, %s71
      %s88 = sphi 0, %s72
      %s96 = sphi 0, %s98
      %s99 = sphi 0, %s96
      %s100 = sphi 0, %s99
      %s116 = sphi 0, %s100
      %s120 = sphi 0, %s120
      %s122 = sphi 0, %s120
      %s123 = sphi 0, %s122
      %s137 = sphi 0, %s123
      %s141 = sphi 0, %s141
      %s143 = sphi 0, %s141
      %s144 = sphi 0, %s143
      %s158 = sphi 0, %s144
      %s162 = sphi 0, %s162
      %s164 = sphi 0, %s162
      %s165 = sphi 0, %s164
      %s179 = sphi 0, %s165
      %s183 = sphi 0, %s183
      %s185 = sphi 0, %s183
      %s186 = sphi 0, %s185
      %s200 = sphi 0, %s186
      %s208 = sphi 0, %s210
      %s211 = sphi 0, %s208
      %s212 = sphi 0, %s211
      %s228 = sphi 0, %s212
    $region4: #{depthwise_separable_conv.3} parent=1 // loop_header_branch
      %19 = sbr.rel (%p17) target = $region8
    $region5: #{depthwise_separable_conv.3} parent=1 // loop_body
      %s21 = ssub.s32 %s16, 1
      %s22 = ssub.s32 %s16, 2
      %s29 = sadd.s32 1, %s24
      %p30 = scmp.ge.s32.totalorder %s29, 1
      %s31 = scalar_select %p30, 0, %s29
      %s32 = sadd.s32 1, %s23
      %s33 = scalar_select %p30, %s32, %s23
      %p34 = scmp.ge.s32.totalorder %s33, 2
      %s35 = scalar_select %p34, 0, %s33
      %s36 = ssub.s32 %s23, %s35
      %s37 = ssub.s32 %s24, %s31
      %s38 = sor.u32 %s36, %s37
      %p39 = scmp.eq.s32.totalorder %s38, 0
      %s41 = sadd.s32 %s40, 1
      %s42 = scalar_select %p39, %s40, %s41
      %p45 = pneg %p39
      %p46 = scmp.eq.s32.totalorder %s16, 1
      %p47 = por %p45, %p46
      %p48 = scmp.ne.s32.totalorder %s40, %s43
      %p49 = scmp.eq.s32.totalorder %s16, 0
      %p50 = por %p48, %p49
      %p51 = scmp.ne.s32.totalorder %s40, %s43
      %p52 = scmp.eq.s32.totalorder %s21, 1
      %p53 = por %p51, %p52
      %p54 = scmp.ne.s32.totalorder %s43, %s44
      %p55 = scmp.eq.s32.totalorder %s21, 0
      %p56 = por %p54, %p55
      %p57 = scmp.ne.s32.totalorder %s43, %s44
      %p58 = scmp.eq.s32.totalorder %s22, 1
      %p59 = por %p57, %p58
      %p61 = scmp.ne.s32.totalorder %s44, %s60
      %p62 = scmp.eq.s32.totalorder %s22, 0
      %p63 = por %p61, %p62
      %s64 = sadd.s32 %s23, %s24
      %s65 = sadd.s32 %s35, %s31
      %s66 = ssub.s32 %s64, %s65
      %p67 = scmp.eq.s32.totalorder %s66, 0
      %s69 = sadd.s32 %s68, 1
      %s70 = scalar_select %p67, %s68, %s69
      %p73 = pneg %p67
      %p74 = scmp.eq.s32.totalorder %s16, 1
      %p75 = por %p73, %p74
      %p76 = scmp.ne.s32.totalorder %s68, %s71
      %p77 = scmp.eq.s32.totalorder %s16, 0
      %p78 = por %p76, %p77
      %p79 = scmp.ne.s32.totalorder %s68, %s71
      %p80 = scmp.eq.s32.totalorder %s21, 1
      %p81 = por %p79, %p80
      %p82 = scmp.ne.s32.totalorder %s71, %s72
      %p83 = scmp.eq.s32.totalorder %s21, 0
      %p84 = por %p82, %p83
      %p85 = scmp.ne.s32.totalorder %s71, %s72
      %p86 = scmp.eq.s32.totalorder %s22, 1
      %p87 = por %p85, %p86
      %p89 = scmp.ne.s32.totalorder %s72, %s88
      %p90 = scmp.eq.s32.totalorder %s22, 0
      %p91 = por %p89, %p90
      %s92 = sadd.s32 %s23, %s24
      %s93 = sadd.s32 %s35, %s31
      %s94 = ssub.s32 %s92, %s93
      %p95 = scmp.eq.s32.totalorder %s94, 0
      %s97 = sadd.s32 %s96, 1
      %s98 = scalar_select %p95, %s96, %s97
      %p101 = pneg %p95
      %p102 = scmp.eq.s32.totalorder %s16, 1
      %p103 = por %p101, %p102
      %p104 = scmp.ne.s32.totalorder %s96, %s99
      %p105 = scmp.eq.s32.totalorder %s16, 0
      %p106 = por %p104, %p105
      %p107 = scmp.ne.s32.totalorder %s96, %s99
      %p108 = scmp.eq.s32.totalorder %s21, 1
      %p109 = por %p107, %p108
      %p110 = scmp.ne.s32.totalorder %s99, %s100
      %p111 = scmp.eq.s32.totalorder %s21, 0
      %p112 = por %p110, %p111
      %p113 = scmp.ne.s32.totalorder %s99, %s100
      %p114 = scmp.eq.s32.totalorder %s22, 1
      %p115 = por %p113, %p114
      %p117 = scmp.ne.s32.totalorder %s100, %s116
      %p118 = scmp.eq.s32.totalorder %s22, 0
      %p119 = por %p117, %p118
      %s121 = sadd.s32 %s120, 1
      %p124 = scmp.eq.s32.totalorder %s16, 1
      %p125 = scmp.ne.s32.totalorder %s120, %s122
      %p126 = scmp.eq.s32.totalorder %s16, 0
      %p127 = por %p125, %p126
      %p128 = scmp.ne.s32.totalorder %s120, %s122
      %p129 = scmp.eq.s32.totalorder %s21, 1
      %p130 = por %p128, %p129
      %p131 = scmp.ne.s32.totalorder %s122, %s123
      %p132 = scmp.eq.s32.totalorder %s21, 0
      %p133 = por %p131, %p132
      %p134 = scmp.ne.s32.totalorder %s122, %s123
      %p135 = scmp.eq.s32.totalorder %s22, 1
      %p136 = por %p134, %p135
      %p138 = scmp.ne.s32.totalorder %s123, %s137
      %p139 = scmp.eq.s32.totalorder %s22, 0
      %p140 = por %p138, %p139
      %s142 = sadd.s32 %s141, 1
      %p145 = scmp.eq.s32.totalorder %s16, 1
      %p146 = scmp.ne.s32.totalorder %s141, %s143
      %p147 = scmp.eq.s32.totalorder %s16, 0
      %p148 = por %p146, %p147
      %p149 = scmp.ne.s32.totalorder %s141, %s143
      %p150 = scmp.eq.s32.totalorder %s21, 1
      %p151 = por %p149, %p150
      %p152 = scmp.ne.s32.totalorder %s143, %s144
      %p153 = scmp.eq.s32.totalorder %s21, 0
      %p154 = por %p152, %p153
      %p155 = scmp.ne.s32.totalorder %s143, %s144
      %p156 = scmp.eq.s32.totalorder %s22, 1
      %p157 = por %p155, %p156
      %p159 = scmp.ne.s32.totalorder %s144, %s158
      %p160 = scmp.eq.s32.totalorder %s22, 0
      %p161 = por %p159, %p160
      %s163 = sadd.s32 %s162, 1
      %p166 = scmp.eq.s32.totalorder %s16, 1
      %p167 = scmp.ne.s32.totalorder %s162, %s164
      %p168 = scmp.eq.s32.totalorder %s16, 0
      %p169 = por %p167, %p168
      %p170 = scmp.ne.s32.totalorder %s162, %s164
      %p171 = scmp.eq.s32.totalorder %s21, 1
      %p172 = por %p170, %p171
      %p173 = scmp.ne.s32.totalorder %s164, %s165
      %p174 = scmp.eq.s32.totalorder %s21, 0
      %p175 = por %p173, %p174
      %p176 = scmp.ne.s32.totalorder %s164, %s165
      %p177 = scmp.eq.s32.totalorder %s22, 1
      %p178 = por %p176, %p177
      %p180 = scmp.ne.s32.totalorder %s165, %s179
      %p181 = scmp.eq.s32.totalorder %s22, 0
      %p182 = por %p180, %p181
      %s184 = sadd.s32 %s183, 1
      %p187 = scmp.eq.s32.totalorder %s16, 1
      %p188 = scmp.ne.s32.totalorder %s183, %s185
      %p189 = scmp.eq.s32.totalorder %s16, 0
      %p190 = por %p188, %p189
      %p191 = scmp.ne.s32.totalorder %s183, %s185
      %p192 = scmp.eq.s32.totalorder %s21, 1
      %p193 = por %p191, %p192
      %p194 = scmp.ne.s32.totalorder %s185, %s186
      %p195 = scmp.eq.s32.totalorder %s21, 0
      %p196 = por %p194, %p195
      %p197 = scmp.ne.s32.totalorder %s185, %s186
      %p198 = scmp.eq.s32.totalorder %s22, 1
      %p199 = por %p197, %p198
      %p201 = scmp.ne.s32.totalorder %s186, %s200
      %p202 = scmp.eq.s32.totalorder %s22, 0
      %p203 = por %p201, %p202
      %s204 = ssub.s32 %s23, %s35
      %s205 = ssub.s32 %s24, %s31
      %s206 = sor.u32 %s204, %s205
      %p207 = scmp.eq.s32.totalorder %s206, 0
      %s209 = sadd.s32 %s208, 1
      %s210 = scalar_select %p207, %s208, %s209
      %p213 = pneg %p207
      %p214 = scmp.eq.s32.totalorder %s16, 1
      %p215 = por %p213, %p214
      %p216 = scmp.ne.s32.totalorder %s208, %s211
      %p217 = scmp.eq.s32.totalorder %s16, 0
      %p218 = por %p216, %p217
      %p219 = scmp.ne.s32.totalorder %s208, %s211
      %p220 = scmp.eq.s32.totalorder %s21, 1
      %p221 = por %p219, %p220
      %p222 = scmp.ne.s32.totalorder %s211, %s212
      %p223 = scmp.eq.s32.totalorder %s21, 0
      %p224 = por %p222, %p223
      %p225 = scmp.ne.s32.totalorder %s211, %s212
      %p226 = scmp.eq.s32.totalorder %s22, 1
      %p227 = por %p225, %p226
      %p229 = scmp.ne.s32.totalorder %s212, %s228
      %p230 = scmp.eq.s32.totalorder %s22, 0
      %p231 = por %p229, %p230
      %p232 = scmp.le.s32.totalorder 1, %s16
      %p233 = scmp.lt.s32.totalorder %s16, 3
      %p234 = pnand %p232, %p233
      %p235 = pneg %p234
      // Predicated region
      $region9: #{depthwise_separable_conv.3} parent=5 // pred_check
        _
      $region10: #{depthwise_separable_conv.3} parent=5 // pred_check_branch
        %237 = sbr.rel (%p234) target = $region12
      $region11: #{depthwise_separable_conv.3} parent=5 // pred_region
        %s238 = ssub.s32 %s16, 1
        // Predicated region
        $region13: #{depthwise_separable_conv.3} parent=11 // pred_check
          %p239 = pneg %p133
        $region14: #{depthwise_separable_conv.3} parent=11 // pred_check_branch
          %241 = sbr.rel (%p239) target = $region16
        $region15: #{depthwise_separable_conv.3} parent=11 // pred_region
          _
        $region16: #{depthwise_separable_conv.3} parent=11 // pred_fallthru
          _
        // Predicated region
        $region17: #{depthwise_separable_conv.3} parent=11 // pred_check
          %p242 = pneg %p154
        $region18: #{depthwise_separable_conv.3} parent=11 // pred_check_branch
          %244 = sbr.rel (%p242) target = $region20
        $region19: #{depthwise_separable_conv.3} parent=11 // pred_region
          _
        $region20: #{depthwise_separable_conv.3} parent=11 // pred_fallthru
          _
        // Predicated region
        $region21: #{depthwise_separable_conv.3} parent=11 // pred_check
          %p245 = pneg %p175
        $region22: #{depthwise_separable_conv.3} parent=11 // pred_check_branch
          %247 = sbr.rel (%p245) target = $region24
        $region23: #{depthwise_separable_conv.3} parent=11 // pred_region
          _
        $region24: #{depthwise_separable_conv.3} parent=11 // pred_fallthru
          _
        // Predicated region
        $region25: #{depthwise_separable_conv.3} parent=11 // pred_check
          %p248 = pneg %p196
        $region26: #{depthwise_separable_conv.3} parent=11 // pred_check_branch
          %250 = sbr.rel (%p248) target = $region28
        $region27: #{depthwise_separable_conv.3} parent=11 // pred_region
          _
        $region28: #{depthwise_separable_conv.3} parent=11 // pred_fallthru
          _
      $region12: #{depthwise_separable_conv.3} parent=5 // pred_fallthru
        _
      %p251 = scmp.lt.s32.totalorder %s16, 2
      // Predicated region
      $region29: #{depthwise_separable_conv.3} parent=5 // pred_check
        %p252 = pneg %p251
      $region30: #{depthwise_separable_conv.3} parent=5 // pred_check_branch
        %254 = sbr.rel (%p252) target = $region32
      $region31: #{depthwise_separable_conv.3} parent=5 // pred_region
        // Predicated region
        $region33: #{depthwise_separable_conv.3} parent=31 // pred_check
          %p255 = pneg %p50
        $region34: #{depthwise_separable_conv.3} parent=31 // pred_check_branch
          %257 = sbr.rel (%p255) target = $region36
        $region35: #{depthwise_separable_conv.3} parent=31 // pred_region
          %p258 = scmp.lt.s32.totalorder %s23, 1
          %s259 = scalar_select %p258, %s23, 1
          %p260 = scmp.lt.s32.totalorder %s24, 0
          %s261 = scalar_select %p260, %s24, 0
          %s262 = sadd.s32 %s261, %s259
          %s263 = smul.addr %s262, 4
          %s264 = scalar_lea.vmem %s0, %s263
        $region36: #{depthwise_separable_conv.3} parent=31 // pred_fallthru
          _
        // Predicated region
        $region37: #{depthwise_separable_conv.3} parent=31 // pred_check
          %p265 = pneg %p78
        $region38: #{depthwise_separable_conv.3} parent=31 // pred_check_branch
          %267 = sbr.rel (%p265) target = $region40
        $region39: #{depthwise_separable_conv.3} parent=31 // pred_region
          %s268 = sadd.s32 %s23, %s24
          %p269 = scmp.lt.s32.totalorder %s268, 1
          %s270 = scalar_select %p269, %s268, 1
          %s271 = smul.addr %s270, 4
          %s272 = scalar_lea.vmem %s1, %s271
          %s273 = sadd.s32 %s23, %s24
        $region40: #{depthwise_separable_conv.3} parent=31 // pred_fallthru
          _
        // Predicated region
        $region41: #{depthwise_separable_conv.3} parent=31 // pred_check
          %p274 = pneg %p106
        $region42: #{depthwise_separable_conv.3} parent=31 // pred_check_branch
          %276 = sbr.rel (%p274) target = $region44
        $region43: #{depthwise_separable_conv.3} parent=31 // pred_region
          %s277 = sadd.s32 %s23, %s24
          %p278 = scmp.lt.s32.totalorder %s277, 1
          %s279 = scalar_select %p278, %s277, 1
          %s280 = smul.addr %s279, 4
          %s281 = scalar_lea.vmem %s2, %s280
          %s282 = sadd.s32 %s23, %s24
        $region44: #{depthwise_separable_conv.3} parent=31 // pred_fallthru
          _
      $region32: #{depthwise_separable_conv.3} parent=5 // pred_fallthru
        _
      %p283 = scmp.le.s32.totalorder 1, %s16
      %p284 = scmp.lt.s32.totalorder %s16, 3
      %p285 = pnand %p283, %p284
      %p286 = pneg %p285
      // Predicated region
      $region45: #{depthwise_separable_conv.3} parent=5 // pred_check
        _
      $region46: #{depthwise_separable_conv.3} parent=5 // pred_check_branch
        %288 = sbr.rel (%p285) target = $region48
      $region47: #{depthwise_separable_conv.3} parent=5 // pred_region
        %s289 = ssub.s32 %s16, 1
        %p290 = scmp.lt.s32.totalorder %s25, 1
        %s291 = scalar_select %p290, %s25, 1
        %p292 = scmp.lt.s32.totalorder %s26, 0
        %s293 = scalar_select %p292, %s26, 0
        %s294 = sadd.s32 %s293, %s291
        %s295 = smul.addr %s294, 4
        %s296 = scalar_lea.vmem %s0, %s295
        %p297 = pneg %p56
        %p298 = pneg %p53
        %s299 = sadd.s32 %s25, %s26
        %p300 = scmp.lt.s32.totalorder %s299, 1
        %s301 = scalar_select %p300, %s299, 1
        %s302 = smul.addr %s301, 4
        %s303 = scalar_lea.vmem %s1, %s302
        %p304 = pneg %p84
        %p305 = pneg %p81
        %s306 = sadd.s32 %s25, %s26
        %p307 = scmp.lt.s32.totalorder %s306, 1
        %s308 = scalar_select %p307, %s306, 1
        %s309 = smul.addr %s308, 4
        %s310 = scalar_lea.vmem %s2, %s309
        %p311 = pneg %p112
        %p312 = pneg %p109
        %p313 = pneg %p133
        %p314 = pneg %p130
        %p315 = pneg %p154
        %p316 = pneg %p151
        %p317 = pneg %p175
        %p318 = pneg %p172
        %p319 = pneg %p196
        %p320 = pneg %p193
        %p321 = pneg %p224
        %p322 = pneg %p221
        %s323 = sand.u32 %s211, 1
        %s324 = scalar_lea.sflag [#allocation3], %s323
        %s325 = sand.u32 %s211, 1
        %s326 = smul.addr %s325, 8
        %s327 = scalar_lea.vmem [#allocation2], %s326
        %p328 = scmp.lt.s32.totalorder %s25, 1
        %s329 = scalar_select %p328, %s25, 1
        %p330 = scmp.lt.s32.totalorder %s26, 0
        %s331 = scalar_select %p330, %s26, 0
        %s332 = sadd.s32 %s331, %s329
        %s333 = smul.addr %s332, 4
        %s334 = scalar_lea.vmem %s0, %s333
        %s335 = sadd.s32 %s25, %s26
        %p336 = scmp.lt.s32.totalorder %s335, 1
        %s337 = scalar_select %p336, %s335, 1
        %s338 = smul.addr %s337, 4
        %s339 = scalar_lea.vmem %s1, %s338
        %s340 = sadd.s32 %s25, %s26
        %s341 = sadd.s32 %s25, %s26
        %p342 = scmp.lt.s32.totalorder %s341, 1
        %s343 = scalar_select %p342, %s341, 1
        %s344 = smul.addr %s343, 4
        %s345 = scalar_lea.vmem %s2, %s344
        %s346 = sadd.s32 %s25, %s26
        %v347 = vld [vmem:[%s334] sm:$0xf]
        %v348 = vld [vmem:[%s339] sm:$0xf]
        %v349 = vld [vmem:[%s345] sm:$0xf]
        %v350 = vld [vmem:[%s3] sm:$0xf]
        %v351 = vld [vmem:[%s4] sm:$0xff]
        %353 = vrot.lane.b32.xlu0 %v347, 1
        %v354 = vpop.permute.xlu0 %353
        %vm356 = vcmask 7168
        %v357 = vsel %vm356, %v348, %v354
        %358 = vrot.lane.b32.xlu0 %v347, 127
        %v359 = vpop.permute.xlu0 %358
        %362 = vrot.lane.b32.xlu0 %v349, 15
        %v363 = vpop.permute.xlu0 %362
        %vm365 = vcmask 121856
        %v366 = vsel %vm365, %v359, %v363
        %368 = vset.pattern.permute.xlu0 0
        %369 = vperm.xlu0 %368, %v350
        %v370 = vpop.permute.xlu0 %369
        %v372 = vmul.f32 %v370, %v357
        %373 = vset.pattern.permute.xlu0 1
        %374 = vperm.xlu0 %373, %v350
        %v375 = vpop.permute.xlu0 %374
        %v377 = vmul.f32 %v375, %v347
        %v378 = vadd.f32 %v372, %v377
        %379 = vset.pattern.permute.xlu0 2
        %380 = vperm.xlu0 %379, %v350
        %v381 = vpop.permute.xlu0 %380
        %v383 = vmul.f32 %v381, %v366
        %v384 = vadd.f32 %v378, %v383
        %vm385 = vcmask 31744
        %v387 = vsel %vm385, %v351, 0
        %vm389 = vcmask 1043456
        %v391 = vsel %vm389, %v384, 0
        %393 = vmatpush.msra.mxu0 0.0
        %394 = vmatpush.msra.mxu0 0.0
        %395 = vmatpush.msra.mxu0 0.0
        %396 = vmatpush.msra.mxu0 0.0
        %397 = vmatpush.msra.mxu0 0.0
        %398 = vmatpush.msra.mxu0 0.0
        %399 = vmatpush.msra.mxu0 0.0
        %400 = vmatpush.msra.mxu0 0.0
        %401 = vmatpush.msra.mxu0 0.0
        %402 = vmatpush.msra.mxu0 0.0
        %403 = vmatpush.msra.mxu0 0.0
        %404 = vmatpush.msra.mxu0 0.0
        %405 = vmatpush.msra.mxu0 0.0
        %406 = vmatpush.msra.mxu0 0.0
        %407 = vmatpush.msra.mxu0 0.0
        %408 = vmatpush.msra.mxu0 %v391
        %409 = vmatmul.f32.gmra.mxu0 %v387
        %v410 = vpop.f32.mrf.mxu0
        %v411 = vadd.f32 0.0, %v410
        %412 = vdwg.mxu0
        %v413 = vld [vmem:[%s5] sm:$0xff]
        %415 = vset.pattern.permute.xlu0 0
        %416 = vperm.xlu0 %415, %v413
        %v417 = vpop.permute.xlu0 %416
        %v419 = vmul.f32 %v411, %v417
        %v420 = vld [vmem:[%s6] sm:$0xff]
        %422 = vset.pattern.permute.xlu0 0
        %423 = vperm.xlu0 %422, %v420
        %v424 = vpop.permute.xlu0 %423
        %v426 = vadd.f32 %v419, %v424
        %v427 = vmax.f32 %v426, 0.0
        %vm428 = vcmask 130048
        %429 = vst.msk [vmem:[%s327] sm:$0xff] %vm428, %v427
        %s430 = sand.u32 %s211, 1
        %s431 = scalar_lea.sflag [#allocation3], %s430
        %s432 = sand.u32 %s211, 1
        %s433 = smul.addr %s432, 8
        %s434 = scalar_lea.vmem [#allocation2], %s433
        // Predicated region
        $region49: #{depthwise_separable_conv.3} parent=47 // pred_check
          %p435 = pneg %p221
        $region50: #{depthwise_separable_conv.3} parent=47 // pred_check_branch
          %437 = sbr.rel (%p435) target = $region52
        $region51: #{depthwise_separable_conv.3} parent=47 // pred_region
          %439 = vsyncadd %s431, 0
          %s440 = sadd.s32 %s26, %s25
          %s441 = smul.addr %s440, 8
          %s442 = scalar_lea.hbm %s7, %s441
          %s444 = sshll.u32 %s434, 4
          %s445 = int_to_ptr.vmem [resolvable:$true] %s444
          %s446 = sshll.u32 %s442, 4
          %s447 = int_to_ptr.hbm [resolvable:$true] %s446
          %449 = dma.vmem_to_hbm [thread:$0]  %s445, 128, %s447, %s431
        $region52: #{depthwise_separable_conv.3} parent=47 // pred_fallthru
          _
      $region48: #{depthwise_separable_conv.3} parent=5 // pred_fallthru
        _
      %p450 = scmp.le.s32.totalorder 2, %s16
      // Predicated region
      $region53: #{depthwise_separable_conv.3} parent=5 // pred_check
        %p451 = pneg %p450
      $region54: #{depthwise_separable_conv.3} parent=5 // pred_check_branch
        %453 = sbr.rel (%p451) target = $region56
      $region55: #{depthwise_separable_conv.3} parent=5 // pred_region
        %s454 = ssub.s32 %s16, 2
        // Predicated region
        $region57: #{depthwise_separable_conv.3} parent=55 // pred_check
          %p455 = pneg %p227
        $region58: #{depthwise_separable_conv.3} parent=55 // pred_check_branch
          %457 = sbr.rel (%p455) target = $region60
        $region59: #{depthwise_separable_conv.3} parent=55 // pred_region
          %s458 = sand.u32 %s212, 1
          %s459 = scalar_lea.sflag [#allocation3], %s458
          %s460 = sand.u32 %s212, 1
          %s461 = smul.addr %s460, 8
          %s462 = scalar_lea.vmem [#allocation2], %s461
          %464 = dma.done %s459, 128
        $region60: #{depthwise_separable_conv.3} parent=55 // pred_fallthru
          _
      $region56: #{depthwise_separable_conv.3} parent=5 // pred_fallthru
        _
    $region6: #{depthwise_separable_conv.3} parent=1 // loop_footer
      %s20 = sadd.s32 1, %s16
    $region7: #{depthwise_separable_conv.3} parent=1 // loop_footer_branch
      %15 = sbr.rel target = $region3
    $region8: #{depthwise_separable_conv.3} parent=1 // loop_exit
      _
    %465 = vsyncpa [#allocation3], 1
    %s466 = scalar_lea.sflag [#allocation3], 1
    %467 = vsyncpa %s466, 1

</llo_original>
